<compile_context>
chip_gen: v5e
topology: v5e:2x2
jax: 0.10.0
libtpu: 0.0.40
codegen_flags: <defaults>
</compile_context>

<pallas_src>
import functools

import jax
import jax.numpy as jnp
from jax.experimental import pallas as pl
from jax.experimental.pallas import tpu as pltpu


def _round_up(n, m):
    return ((n + m - 1) // m) * m


def encoder_kernel(x_ref, w_ref, b_ref, o_ref):
    """One (TB, din) row-tile: o = relu(x @ W + b)."""
    # Native-dtype operands straight to the MXU, f32 accumulation.
    y = jnp.dot(x_ref[...], w_ref[...], preferred_element_type=jnp.float32)
    y = y + b_ref[...]                                   # (1, hidden) bias broadcast
    o_ref[...] = jnp.maximum(y, 0.0).astype(o_ref.dtype)  # ReLU on VPU, cast on store


def _pick_tile(n8, block_rows, *, target_blocks=8, min_tile=512, max_tile=8192):
    """Pick a row-tile size (multiple of 8) for n8 rows (n8 already %8==0)."""
    if n8 <= min_tile:
        # Tiny problem: single block (or respect an explicit small block_rows).
        return max(8, min(n8, _round_up(block_rows, 8)))
    # Aim for >= target_blocks grid steps so v7x megacore shards the row axis,
    # but never drop below min_tile rows (HBM-roofline efficiency) and never
    # exceed max_tile (keeps double-buffered tiles inside v5e's 16 MiB VMEM).
    tb = _round_up(pl.cdiv(n8, target_blocks), 8)
    tb = max(tb, min_tile)
    tb = min(tb, _round_up(block_rows, 8), max_tile, n8)
    return _round_up(tb, 8)


@functools.partial(jax.jit, static_argnames=("block_rows", "min_pallas_rows", "out_dtype"))
def encoder_forward(x, params, *, block_rows=4096, min_pallas_rows=1024, out_dtype=None):
    """x: (..., din) -> (..., hidden), matching Encoder.forward."""
    w_t = params["w_t"]          # (din, hidden) == W_fc^T
    b = params["b"]              # (1, hidden)
    din, hidden = w_t.shape
    assert x.shape[-1] == din, "last dim of x must equal din"
    if out_dtype is None:
        out_dtype = x.dtype

    lead_shape = x.shape[:-1]
    x2 = x.reshape(-1, din)
    n = x2.shape[0]

    # Fast path: for tiny batches the pallas_call launch / pipeline overhead
    # dwarfs the sub-microsecond compute; let XLA fuse the whole thing.
    if n < min_pallas_rows:
        y = jnp.dot(x2, w_t, preferred_element_type=jnp.float32) + b
        return jnp.maximum(y, 0.0).astype(out_dtype).reshape(*lead_shape, hidden)

    # Pad at most 7 rows (8-sublane rule).  No full-tile padding: the last
    # ragged grid block is masked by Pallas on both read and write.
    n8 = _round_up(n, 8)
    if n8 != n:
        x2 = jnp.pad(x2, ((0, n8 - n), (0, 0)))

    tb = _pick_tile(n8, block_rows)
    grid = (pl.cdiv(n8, tb),)

    x_bytes = x.dtype.itemsize
    o_bytes = jnp.dtype(out_dtype).itemsize
    cost = pl.CostEstimate(
        flops=2 * n8 * din * hidden,
        transcendentals=0,
        bytes_accessed=(n8 * din * x_bytes + n8 * hidden * o_bytes
                        + din * hidden * w_t.dtype.itemsize
                        + hidden * b.dtype.itemsize),
    )

    out = pl.pallas_call(
        encoder_kernel,
        out_shape=jax.ShapeDtypeStruct((n8, hidden), out_dtype),
        grid=grid,
        in_specs=[
            pl.BlockSpec((tb, din), lambda i: (i, 0)),       # streamed row tile of x
            pl.BlockSpec((din, hidden), lambda i: (0, 0)),   # weight, VMEM-resident
            pl.BlockSpec((1, hidden), lambda i: (0, 0)),     # bias, VMEM-resident
        ],
        out_specs=pl.BlockSpec((tb, hidden), lambda i: (i, 0)),  # lane-dense (hidden=128)
        compiler_params=pltpu.CompilerParams(
            dimension_semantics=("parallel",),               # shard row blocks across TCs
        ),
        cost_estimate=cost,
    )(x2, w_t, b)

    if n8 != n:
        out = out[:n]
    return out.reshape(*lead_shape, hidden)


def init_params(key, din, hidden_dim, dtype=jnp.float32):
    """Deterministic init matching nn.Linear(din, hidden_dim) parameter shapes.

    PyTorch: weight (hidden, din), bias (hidden,), both U(-1/sqrt(din), 1/sqrt(din)).
    Stored pre-transposed / 2-D for the kernel.
    """
    k_w, k_b = jax.random.split(key, 2)
    bound = 1.0 / jnp.sqrt(din)
    return {
        "w_t": jax.random.uniform(k_w, (din, hidden_dim), dtype, -bound, bound),
        "b":   jax.random.uniform(k_b, (1, hidden_dim), jnp.float32, -bound, bound),
    }


def encoder_reference(x, params):
    """Pure-JAX reference of the PyTorch forward (for correctness check)."""
    y = x @ params["w_t"] + params["b"][0]
    return jnp.maximum(y, 0.0)


if __name__ == "__main__":
    DIN, HIDDEN = 32, 128

    key = jax.random.PRNGKey(0)
    k_x1, k_x2, k_p = jax.random.split(key, 3)
    params = init_params(k_p, DIN, HIDDEN)

    # (1) Tiny DGN-style input (batch=2, n_agent=3): forced through the Pallas
    #     path (min_pallas_rows=0) and checked against the pure-JAX reference.
    x_small = jax.random.normal(k_x1, (2, 3, DIN), jnp.float32)
    emb_small = encoder_forward(x_small, params, min_pallas_rows=0)
    jax.block_until_ready(emb_small)
    ref_small = encoder_reference(x_small, params)
    assert emb_small.shape == (2, 3, HIDDEN)
    assert jnp.allclose(emb_small, ref_small, atol=1e-5, rtol=1e-5)

    # (2) Larger batch (8 x 512 agents = 4096 rows): exercises the multi-block
    #     "parallel" row grid (8 blocks of 512 rows), still small data.
    x_big = jax.random.normal(k_x2, (8, 512, DIN), jnp.float32)
    emb_big = encoder_forward(x_big, params)
    jax.block_until_ready(emb_big)
    ref_big = encoder_reference(x_big, params)
    assert emb_big.shape == (8, 512, HIDDEN)
    assert jnp.allclose(emb_big, ref_big, atol=1e-4, rtol=1e-4)

    print("KERNEL_OK")
</pallas_src>

<mosaic_0001>
module attributes {stable_mosaic.version = 11 : i64} {
  func.func @encoder_kernel(%arg0: i32, %arg1: memref<8x32xf32, #tpu.memory_space<vmem>>, %arg2: memref<32x128xf32, #tpu.memory_space<vmem>>, %arg3: memref<1x128xf32, #tpu.memory_space<vmem>>, %arg4: memref<8x128xf32, #tpu.memory_space<vmem>>) attributes {dimension_semantics = [#tpu.dimension_semantics<parallel>], iteration_bounds = array<i64: 1>, scalar_prefetch = 0 : i64, scratch_operands = 0 : i64, tpu.core_type = #tpu.core_type<tc>, window_params = [{transform_indices = @transform_0, window_bounds = array<i64: 8, 32>}, {pipeline_mode = #tpu.pipeline_mode<synchronous>, transform_indices = @transform_1, window_bounds = array<i64: 32, 128>}, {pipeline_mode = #tpu.pipeline_mode<synchronous>, transform_indices = @transform_2, window_bounds = array<i64: 1, 128>}, {transform_indices = @transform_3, window_bounds = array<i64: 8, 128>}]} {
    %c0 = arith.constant 0 : index
    %c0_0 = arith.constant 0 : index
    %0 = vector.load %arg1[%c0, %c0_0] : memref<8x32xf32, #tpu.memory_space<vmem>>, vector<8x32xf32>
    %c0_1 = arith.constant 0 : index
    %c0_2 = arith.constant 0 : index
    %1 = vector.load %arg2[%c0_1, %c0_2] : memref<32x128xf32, #tpu.memory_space<vmem>>, vector<32x128xf32>
    %cst = arith.constant dense<0.000000e+00> : vector<8x128xf32>
    %2 = tpu.matmul %0, %1, %cst {dimension_numbers = #tpu.dot_dimension_numbers<[1], [0], [0], [1], [0, 0, 1, 1], [], []>} : vector<8x32xf32>, vector<32x128xf32>, vector<8x128xf32> -> vector<8x128xf32>
    %c0_3 = arith.constant 0 : index
    %c0_4 = arith.constant 0 : index
    %3 = vector.load %arg3[%c0_3, %c0_4] : memref<1x128xf32, #tpu.memory_space<vmem>>, vector<1x128xf32>
    %4 = vector.broadcast %3 : vector<1x128xf32> to vector<8x128xf32>
    %5 = arith.addf %2, %4 : vector<8x128xf32>
    %cst_5 = arith.constant 0.000000e+00 : f32
    %6 = vector.broadcast %cst_5 : f32 to vector<8x128xf32>
    %7 = arith.maximumf %5, %6 : vector<8x128xf32>
    %c0_6 = arith.constant 0 : index
    %c0_7 = arith.constant 0 : index
    %8 = vector.load %arg4[%c0_6, %c0_7] : memref<8x128xf32, #tpu.memory_space<vmem>>, vector<8x128xf32>
    tpu.vector_store %arg4[%c0_6, %c0_7], %7 {strides = array<i32>} : memref<8x128xf32, #tpu.memory_space<vmem>>, vector<8x128xf32>,
    return
  }
  func.func @transform_0(%arg0: i32) -> (i32, i32) {
    %c0_i32 = arith.constant 0 : i32
    %c0_i32_0 = arith.constant 0 : i32
    return %arg0, %c0_i32 : i32, i32
  }
  func.func @transform_1(%arg0: i32) -> (i32, i32) {
    %c0_i32 = arith.constant 0 : i32
    %c0_i32_0 = arith.constant 0 : i32
    %c0_i32_1 = arith.constant 0 : i32
    return %c0_i32, %c0_i32_0 : i32, i32
  }
  func.func @transform_2(%arg0: i32) -> (i32, i32) {
    %c0_i32 = arith.constant 0 : i32
    %c0_i32_0 = arith.constant 0 : i32
    %c0_i32_1 = arith.constant 0 : i32
    return %c0_i32, %c0_i32_0 : i32, i32
  }
  func.func @transform_3(%arg0: i32) -> (i32, i32) {
    %c0_i32 = arith.constant 0 : i32
    %c0_i32_0 = arith.constant 0 : i32
    return %arg0, %c0_i32 : i32, i32
  }
}

</mosaic_0001>

<llo_original>
// kernel: encoder_forward.1
$region0: #{encoder_forward.1}
  #allocation0 [shape = 'u32[]', space=smem, size = 0x4, offset = 0x4, fixed_abs, tag = 'smem constant byte address 0x4 - core index']
  #allocation1 [shape = 'u32[72,128]{1,0:T(1,128)}', space=vmem, size = 0x9000, scoped, tag = 'internal scratch']
  %s0 = inlined_call_operand.vmem [shape: f32[8,32], index: 0, kind: input, shape index: {}]
  %s1 = inlined_call_operand.vmem [shape: f32[32,128], index: 1, kind: input, shape index: {}]
  %s2 = inlined_call_operand.vmem [shape: f32[1,128], index: 2, kind: input, shape index: {}]
  %s3 = inlined_call_operand.vmem [shape: f32[8,128], index: 3, kind: output, shape index: {}]
  %s4 = sld [smem:[#allocation0]]
  $region22: #{encoder_forward.1} parent=0
    _
  %s6 = ssub.s32 1, %s4
  %s7 = scalar_select 0, %s6, %s4
  // Predicated region
  $region2: #{encoder_forward.1} parent=0 // pred_check
    _
  $region3: #{encoder_forward.1} parent=0 // pred_check_branch
    %9 = sbr.rel (0) target = $region5
  $region4: #{encoder_forward.1} parent=0 // pred_region
    _
  $region5: #{encoder_forward.1} parent=0 // pred_fallthru
    _
  // Predicated region
  $region6: #{encoder_forward.1} parent=0 // pred_check
    _
  $region7: #{encoder_forward.1} parent=0 // pred_check_branch
    %11 = sbr.rel (0) target = $region9
  $region8: #{encoder_forward.1} parent=0 // pred_region
    _
  $region9: #{encoder_forward.1} parent=0 // pred_fallthru
    _
  // Predicated region
  $region10: #{encoder_forward.1} parent=0 // pred_check
    _
  $region11: #{encoder_forward.1} parent=0 // pred_check_branch
    %13 = sbr.rel (0) target = $region13
  $region12: #{encoder_forward.1} parent=0 // pred_region
    _
  $region13: #{encoder_forward.1} parent=0 // pred_fallthru
    _
  %v14 = vld [vmem:[%s0] sm:$0xff]
  %v15 = vld [vmem:[%s1] sm:$0xff]
  %v16 = vld [vmem:[%s1 + $0x8] sm:$0xff]
  %v17 = vld [vmem:[%s1 + $0x10] sm:$0xff]
  %v18 = vld [vmem:[%s1 + $0x18] sm:$0xff]
  %v19 = vld [vmem:[%s2] sm:$0x1]
  %v21 = vperm.slane %v19, 0
  %vm23 = vcmask 261120
  %v25 = vsel %vm23, %v14, 0
  %27 = vmatpush.msra.mxu0 0.0
  %28 = vmatpush.msra.mxu0 0.0
  %29 = vmatpush.msra.mxu0 0.0
  %30 = vmatpush.msra.mxu0 0.0
  %31 = vmatpush.msra.mxu0 0.0
  %32 = vmatpush.msra.mxu0 0.0
  %33 = vmatpush.msra.mxu0 0.0
  %34 = vmatpush.msra.mxu0 0.0
  %35 = vmatpush.msra.mxu0 0.0
  %36 = vmatpush.msra.mxu0 0.0
  %37 = vmatpush.msra.mxu0 0.0
  %38 = vmatpush.msra.mxu0 0.0
  %39 = vmatpush.msra.mxu0 %v18
  %40 = vmatpush.msra.mxu0 %v17
  %41 = vmatpush.msra.mxu0 %v16
  %42 = vmatpush.msra.mxu0 %v15
  %43 = vmatmul.f32.gmra.mxu0 %v25
  %v44 = vpop.f32.mrf.mxu0
  %v45 = vadd.f32 %v21, %v44
  %46 = vdwg.mxu0
  %v47 = vmax.f32 %v45, 0.0
  %48 = vst [vmem:[%s3] sm:$0xff] %v47
  // Predicated region
  $region14: #{encoder_forward.1} parent=0 // pred_check
    _
  $region15: #{encoder_forward.1} parent=0 // pred_check_branch
    %50 = sbr.rel (0) target = $region17
  $region16: #{encoder_forward.1} parent=0 // pred_region
    _
  $region17: #{encoder_forward.1} parent=0 // pred_fallthru
    _
  // Predicated region
  $region18: #{encoder_forward.1} parent=0 // pred_check
    _
  $region19: #{encoder_forward.1} parent=0 // pred_check_branch
    %52 = sbr.rel (0) target = $region21
  $region20: #{encoder_forward.1} parent=0 // pred_region
    _
  $region21: #{encoder_forward.1} parent=0 // pred_fallthru
    _

</llo_original>
